<compile_context>
chip_gen: v6e
topology: v6e:2x2x1
jax: 0.10.0
libtpu: 0.0.40
codegen_flags: <defaults>
</compile_context>

<pallas_src>
import jax
import jax.numpy as jnp
from jax.experimental import pallas as pl
from jax.experimental.pallas import tpu as pltpu


def _round_up(a: int, m: int) -> int:
    return ((a + m - 1) // m) * m


# ---------------------------------------------------------------------------
# Kernel: fused  relu(x @ W1 + b1)  ->  fc2 (1 unit, VPU+XLU)  ->  softmax(dim=1)
# ---------------------------------------------------------------------------
def value_net_kernel(x_ref, w1_ref, cb_ref, b2_ref, o_ref):
    x = x_ref[...]                                    # (tb, S)  f32 (or bf16 opt-in)
    w1 = w1_ref[...]                                  # (S, H)   same dtype as x
    b1 = cb_ref[0:1, :]                               # (1, H)   f32
    w2v = cb_ref[1:2, :]                              # (1, H)   f32 (fc2 weight row)

    # fc1 + ReLU: MXU matmul with f32 accumulation; elementwise stays f32.
    h = jnp.dot(x, w1, preferred_element_type=jnp.float32) + b1
    h = jnp.maximum(h, 0.0)                           # (tb, H)

    # fc2 with a single output unit: elementwise multiply (VPU) + row reduction
    # (XLU) — no padded 128-lane MXU pass, no pad-lane sentinel needed.
    logits = jnp.sum(h * w2v, axis=-1, keepdims=True) + b2_ref[...]   # (tb, 1)

    # softmax over dim=1.  With a single real lane this is identically 1.0, but
    # we keep the exact forward semantics of the PyTorch module.
    m = jnp.max(logits, axis=-1, keepdims=True)
    e = jnp.exp(logits - m)
    o_ref[...] = e / jnp.sum(e, axis=-1, keepdims=True)               # (tb, 1)


# ---------------------------------------------------------------------------
# Wrapper: one-time parameter prep; the returned jitted forward closes over the
# prepped device constants (only pallas_call + optional pad/slice run per step).
# ---------------------------------------------------------------------------
def make_value_net_forward(w1, b1, w2, b2, *, batch_tile=4096):
    """w1: (H, S), b1: (H,), w2: (A, H) with A == 1, b2: (A,) — PyTorch Linear layout."""
    H, S = w1.shape
    A = w2.shape[0]
    assert A == 1, "ValueNet head has a single output unit"
    assert batch_tile % 8 == 0

    # One-time prep (hoisted out of the per-call hot path).
    w1_t = jnp.asarray(w1, jnp.float32).T.reshape(S, H)                  # (S, H)
    consts = jnp.concatenate(
        [jnp.asarray(b1, jnp.float32).reshape(1, H),
         jnp.asarray(w2, jnp.float32).reshape(1, H)], axis=0)            # (2, H): [b1; w2]
    b2_2d = jnp.asarray(b2, jnp.float32).reshape(1, 1)                   # (1, 1)

    @jax.jit
    def forward(x):
        B = x.shape[0]

        # bf16 MXU path only if the caller already supplies bf16 (casting f32 x
        # here would add an extra HBM pass on the dominant stream).
        if x.dtype == jnp.bfloat16:
            xk, w1k = x, w1_t.astype(jnp.bfloat16)
        else:
            xk, w1k = x.astype(jnp.float32), w1_t

        # --- batch tiling: cdiv-robust, sublane-aligned, megacore-friendly ----
        tb = min(batch_tile, _round_up(B, 8))
        tb = _round_up(tb, 8)
        if B >= 512 and pl.cdiv(B, tb) < 2:
            # Ensure >= 2 grid steps so both TensorCores are busy on v7x.
            tb = _round_up(-(-B // 2), 8)
        n_blk = pl.cdiv(B, tb)
        B_pad = n_blk * tb
        if B_pad != B:
            xk = jnp.pad(xk, ((0, B_pad - B), (0, 0)))

        out_pad = pl.pallas_call(
            value_net_kernel,
            out_shape=jax.ShapeDtypeStruct((B_pad, 1), jnp.float32),
            grid=(n_blk,),
            in_specs=[
                pl.BlockSpec((tb, S), lambda i: (i, 0)),     # x tile (streamed)
                pl.BlockSpec((S, H), lambda i: (0, 0)),      # W1^T     (grid-invariant)
                pl.BlockSpec((2, H), lambda i: (0, 0)),      # [b1; w2] (grid-invariant)
                pl.BlockSpec((1, 1), lambda i: (0, 0)),      # b2       (grid-invariant)
            ],
            out_specs=pl.BlockSpec((tb, 1), lambda i: (i, 0)),  # real-width output
            compiler_params=pltpu.CompilerParams(
                dimension_semantics=("parallel",)),
        )(xk, w1k, consts, b2_2d)

        return out_pad if B_pad == B else out_pad[:B]

    return forward


# ---------------------------------------------------------------------------
# Deterministic parameter init (mirrors torch nn.init.orthogonal_ + zero bias)
# ---------------------------------------------------------------------------
def orthogonal_init(key, out_dim, in_dim, gain=1.0):
    n_rows, n_cols = out_dim, in_dim
    flat = jax.random.normal(key, (max(n_rows, n_cols), min(n_rows, n_cols)),
                             dtype=jnp.float32)
    q, r = jnp.linalg.qr(flat)
    d = jnp.sign(jnp.diagonal(r))
    q = q * d[None, :]
    if n_rows < n_cols:
        q = q.T
    return gain * q[:n_rows, :n_cols]


def reference_forward(x, w1, b1, w2, b2):
    h = jnp.maximum(x @ w1.T + b1, 0.0)
    logits = h @ w2.T + b2
    return jax.nn.softmax(logits, axis=1)


if __name__ == "__main__":
    state_dim = 32
    hidden_dim = 128

    key = jax.random.PRNGKey(0)
    k_x1, k_x2, k_w1, k_w2 = jax.random.split(key, 4)

    w1 = orthogonal_init(k_w1, hidden_dim, state_dim, gain=1.0)   # fc1.weight (H, S)
    b1 = jnp.zeros((hidden_dim,), jnp.float32)                    # fc1.bias
    w2 = orthogonal_init(k_w2, 1, hidden_dim, gain=0.01)          # fc2.weight (1, H)
    b2 = jnp.zeros((1,), jnp.float32)                             # fc2.bias

    forward = make_value_net_forward(w1, b1, w2, b2)

    # Small batch (single grid step).
    x_small = jax.random.normal(k_x1, (8, state_dim), dtype=jnp.float32)
    out_small = jax.block_until_ready(forward(x_small))
    ref_small = reference_forward(x_small, w1, b1, w2, b2)
    assert out_small.shape == (8, 1)
    assert jnp.allclose(jnp.sum(out_small, axis=1), 1.0, atol=1e-5)
    assert jnp.allclose(out_small, ref_small, atol=1e-5, rtol=1e-5)

    # Ragged batch exercising the cdiv padding + two-block (megacore) path.
    x_big = jax.random.normal(k_x2, (523, state_dim), dtype=jnp.float32)
    out_big = jax.block_until_ready(forward(x_big))
    ref_big = reference_forward(x_big, w1, b1, w2, b2)
    assert out_big.shape == (523, 1)
    assert jnp.allclose(out_big, ref_big, atol=1e-5, rtol=1e-5)

    print("KERNEL_OK")
</pallas_src>

<mosaic_0001>
module attributes {stable_mosaic.version = 11 : i64} {
  func.func @value_net_kernel(%arg0: i32, %arg1: memref<8x32xf32, #tpu.memory_space<vmem>>, %arg2: memref<32x128xf32, #tpu.memory_space<vmem>>, %arg3: memref<2x128xf32, #tpu.memory_space<vmem>>, %arg4: memref<1x1xf32, #tpu.memory_space<vmem>>, %arg5: memref<8x1xf32, #tpu.memory_space<vmem>>) attributes {dimension_semantics = [#tpu.dimension_semantics<parallel>], iteration_bounds = array<i64: 1>, scalar_prefetch = 0 : i64, scratch_operands = 0 : i64, tpu.core_type = #tpu.core_type<tc>, window_params = [{transform_indices = @transform_0, window_bounds = array<i64: 8, 32>}, {pipeline_mode = #tpu.pipeline_mode<synchronous>, transform_indices = @transform_1, window_bounds = array<i64: 32, 128>}, {pipeline_mode = #tpu.pipeline_mode<synchronous>, transform_indices = @transform_2, window_bounds = array<i64: 2, 128>}, {pipeline_mode = #tpu.pipeline_mode<synchronous>, transform_indices = @transform_3, window_bounds = array<i64: 1, 1>}, {transform_indices = @transform_4, window_bounds = array<i64: 8, 1>}]} {
    %c0 = arith.constant 0 : index
    %c0_0 = arith.constant 0 : index
    %0 = vector.load %arg1[%c0, %c0_0] : memref<8x32xf32, #tpu.memory_space<vmem>>, vector<8x32xf32>
    %c0_1 = arith.constant 0 : index
    %c0_2 = arith.constant 0 : index
    %1 = vector.load %arg2[%c0_1, %c0_2] : memref<32x128xf32, #tpu.memory_space<vmem>>, vector<32x128xf32>
    %c0_3 = arith.constant 0 : index
    %c0_4 = arith.constant 0 : index
    %2 = vector.load %arg3[%c0_3, %c0_4] : memref<2x128xf32, #tpu.memory_space<vmem>>, vector<1x128xf32>
    %c1 = arith.constant 1 : index
    %c0_5 = arith.constant 0 : index
    %3 = vector.load %arg3[%c1, %c0_5] : memref<2x128xf32, #tpu.memory_space<vmem>>, vector<1x128xf32>
    %cst = arith.constant dense<0.000000e+00> : vector<8x128xf32>
    %4 = tpu.matmul %0, %1, %cst {dimension_numbers = #tpu.dot_dimension_numbers<[1], [0], [0], [1], [0, 0, 1, 1], [], []>} : vector<8x32xf32>, vector<32x128xf32>, vector<8x128xf32> -> vector<8x128xf32>
    %5 = vector.broadcast %2 : vector<1x128xf32> to vector<8x128xf32>
    %6 = arith.addf %4, %5 : vector<8x128xf32>
    %cst_6 = arith.constant 0.000000e+00 : f32
    %7 = vector.broadcast %cst_6 : f32 to vector<8x128xf32>
    %8 = arith.maximumf %6, %7 : vector<8x128xf32>
    %9 = vector.broadcast %3 : vector<1x128xf32> to vector<8x128xf32>
    %10 = arith.mulf %8, %9 : vector<8x128xf32>
    %cst_7 = arith.constant dense<0.000000e+00> : vector<8xf32>
    %11 = vector.multi_reduction <add>, %10, %cst_7 [1] : vector<8x128xf32> to vector<8xf32>
    %12 = vector.shape_cast %11 : vector<8xf32> to vector<8x1xf32>
    %c0_8 = arith.constant 0 : index
    %c0_9 = arith.constant 0 : index
    %13 = vector.load %arg4[%c0_8, %c0_9] : memref<1x1xf32, #tpu.memory_space<vmem>>, vector<1x1xf32>
    %14 = vector.broadcast %13 : vector<1x1xf32> to vector<8x1xf32>
    %15 = arith.addf %12, %14 : vector<8x1xf32>
    %cst_10 = arith.constant dense<0xFF800000> : vector<8xf32>
    %16 = vector.multi_reduction <maximumf>, %15, %cst_10 [1] : vector<8x1xf32> to vector<8xf32>
    %17 = vector.shape_cast %16 : vector<8xf32> to vector<8x1xf32>
    %18 = arith.subf %15, %17 : vector<8x1xf32>
    %19 = math.exp %18 : vector<8x1xf32>
    %cst_11 = arith.constant dense<0.000000e+00> : vector<8xf32>
    %20 = vector.multi_reduction <add>, %19, %cst_11 [1] : vector<8x1xf32> to vector<8xf32>
    %21 = vector.shape_cast %20 : vector<8xf32> to vector<8x1xf32>
    %22 = arith.divf %19, %21 : vector<8x1xf32>
    %c0_12 = arith.constant 0 : index
    %c0_13 = arith.constant 0 : index
    %23 = vector.load %arg5[%c0_12, %c0_13] : memref<8x1xf32, #tpu.memory_space<vmem>>, vector<8x1xf32>
    tpu.vector_store %arg5[%c0_12, %c0_13], %22 {strides = array<i32>} : memref<8x1xf32, #tpu.memory_space<vmem>>, vector<8x1xf32>,
    return
  }
  func.func @transform_0(%arg0: i32) -> (i32, i32) {
    %c0_i32 = arith.constant 0 : i32
    %c0_i32_0 = arith.constant 0 : i32
    return %arg0, %c0_i32 : i32, i32
  }
  func.func @transform_1(%arg0: i32) -> (i32, i32) {
    %c0_i32 = arith.constant 0 : i32
    %c0_i32_0 = arith.constant 0 : i32
    %c0_i32_1 = arith.constant 0 : i32
    return %c0_i32, %c0_i32_0 : i32, i32
  }
  func.func @transform_2(%arg0: i32) -> (i32, i32) {
    %c0_i32 = arith.constant 0 : i32
    %c0_i32_0 = arith.constant 0 : i32
    %c0_i32_1 = arith.constant 0 : i32
    return %c0_i32, %c0_i32_0 : i32, i32
  }
  func.func @transform_3(%arg0: i32) -> (i32, i32) {
    %c0_i32 = arith.constant 0 : i32
    %c0_i32_0 = arith.constant 0 : i32
    %c0_i32_1 = arith.constant 0 : i32
    return %c0_i32, %c0_i32_0 : i32, i32
  }
  func.func @transform_4(%arg0: i32) -> (i32, i32) {
    %c0_i32 = arith.constant 0 : i32
    %c0_i32_0 = arith.constant 0 : i32
    return %arg0, %c0_i32 : i32, i32
  }
}

</mosaic_0001>

<llo_original>
// kernel: forward.1
$region0: #{forward.1}
  #allocation0 [shape = 'u32[]', space=smem, size = 0x4, offset = 0x4, fixed_abs, tag = 'smem constant byte address 0x4 - core index']
  #allocation1 [shape = 'u32[144,128]{1,0:T(1,128)}', space=vmem, size = 0x12000, scoped, tag = 'internal scratch']
  #allocation2 [shape = 'f32[1,1]{1,0:T(1,128)S(1)}', space=vmem, size = 0x200, scoped, tag = 'scoped memory for forward.1']
  %s0 = inlined_call_operand.hbm [shape: f32[8,32], index: 0, kind: input, shape index: {}]
  %s1 = inlined_call_operand.hbm [shape: f32[32,128], index: 1, kind: input, shape index: {}]
  %s2 = inlined_call_operand.vmem [shape: f32[2,128], index: 2, kind: input, shape index: {}]
  %s3 = inlined_call_operand.<no memory space> [shape: f32[1,1], index: 3, kind: input, shape index: {}]
  %s4 = inlined_call_operand.vmem [shape: f32[8,1], index: 4, kind: output, shape index: {}]
  %s5 = sld [smem:[#allocation0]]
  $region34: #{forward.1} parent=0
    _
  %s7 = ssub.s32 1, %s5
  %s8 = scalar_select 0, %s7, %s5
  %v9 = vstv %s3
  %10 = vst [vmem:[#allocation2] sm:$0x1] %v9
  $region1: #{forward.1} parent=0
    #allocation3 [shape = 'u8[4096]{0}', space=vmem, size = 0x1000, scoped, tag = 'input window, operand 0, single buffered']
    #allocation4 [shape = 's32[1]{0}', space=sflag, size = 0x4, scoped, tag = 'scoped memory for forward.1']
    #allocation5 [shape = 'u8[16384]{0}', space=vmem, size = 0x4000, scoped, tag = 'input window, operand 1, single buffered']
    #allocation6 [shape = 's32[1]{0}', space=sflag, size = 0x4, scoped, tag = 'scoped memory for forward.1']
    %11 = vsyncpa [#allocation4], 0
    %12 = vsyncpa [#allocation6], 0
    // Predicated region
    $region2: #{forward.1} parent=1 // pred_check
      _
    $region3: #{forward.1} parent=1 // pred_check_branch
      %14 = sbr.rel (0) target = $region5
    $region4: #{forward.1} parent=1 // pred_region
      %s16 = ssub.s32 128, 128
      %17 = vsyncadd [#allocation4], %s16
      %s19 = sshll.u32 [#allocation3], 4
      %s20 = int_to_ptr.vmem [resolvable:$true] %s19
      %22 = dma.hbm_to_vmem [thread:$0]  %s0, 128, %s20, [#allocation4]
    $region5: #{forward.1} parent=1 // pred_fallthru
      _
    // Predicated region
    $region6: #{forward.1} parent=1 // pred_check
      _
    $region7: #{forward.1} parent=1 // pred_check_branch
      %24 = sbr.rel (0) target = $region9
    $region8: #{forward.1} parent=1 // pred_region
      %s26 = ssub.s32 512, 512
      %27 = vsyncadd [#allocation6], %s26
      %s28 = sshll.u32 [#allocation5], 4
      %s29 = int_to_ptr.vmem [resolvable:$true] %s28
      %34 = dma.hbm_to_vmem [thread:$0]  %s1, 512, %s29, [#allocation6], 128, 128, 8
    $region9: #{forward.1} parent=1 // pred_fallthru
      _
    // Predicated region
    $region10: #{forward.1} parent=1 // pred_check
      _
    $region11: #{forward.1} parent=1 // pred_check_branch
      %36 = sbr.rel (0) target = $region13
    $region12: #{forward.1} parent=1 // pred_region
      _
    $region13: #{forward.1} parent=1 // pred_fallthru
      _
    // Predicated region
    $region14: #{forward.1} parent=1 // pred_check
      _
    $region15: #{forward.1} parent=1 // pred_check_branch
      %38 = sbr.rel (0) target = $region17
    $region16: #{forward.1} parent=1 // pred_region
      _
    $region17: #{forward.1} parent=1 // pred_fallthru
      _
    // Predicated region
    $region18: #{forward.1} parent=1 // pred_check
      _
    $region19: #{forward.1} parent=1 // pred_check_branch
      %40 = sbr.rel (0) target = $region21
    $region20: #{forward.1} parent=1 // pred_region
      %41 = dma.done [#allocation4], 128
    $region21: #{forward.1} parent=1 // pred_fallthru
      _
    // Predicated region
    $region22: #{forward.1} parent=1 // pred_check
      _
    $region23: #{forward.1} parent=1 // pred_check_branch
      %43 = sbr.rel (0) target = $region25
    $region24: #{forward.1} parent=1 // pred_region
      %44 = dma.done [#allocation6], 512
    $region25: #{forward.1} parent=1 // pred_fallthru
      _
    %v45 = vld [vmem:[#allocation3] sm:$0xff]
    %v46 = vld [vmem:[#allocation5] sm:$0xff]
    %v47 = vld [vmem:[#allocation5 + $0x8] sm:$0xff]
    %v48 = vld [vmem:[#allocation5 + $0x10] sm:$0xff]
    %v49 = vld [vmem:[#allocation5 + $0x18] sm:$0xff]
    %v50 = vld [vmem:[%s2] sm:$0x1]
    %v51 = vld [vmem:[%s2 + $0x1] sm:$0x1]
    %v52 = vlaneseq
    %v53 = vshrl.u32 %v52, 7
    %v54 = vsub.s32 0, %v53
    %v55 = vrot.slane %v50, %v54
    %vm56 = vcmask 261120
    %v58 = vsel %vm56, %v45, 0
    %60 = vmatprep.subr.mxu0 0.0
    %61 = vmatpush1.msra.mxu0 0.0
    %62 = vmatprep.subr.mxu0 0.0
    %63 = vmatpush1.msra.mxu0 0.0
    %64 = vmatprep.subr.mxu0 0.0
    %65 = vmatpush1.msra.mxu0 0.0
    %66 = vmatprep.subr.mxu0 0.0
    %67 = vmatpush1.msra.mxu0 0.0
    %68 = vmatprep.subr.mxu0 0.0
    %69 = vmatpush1.msra.mxu0 0.0
    %70 = vmatprep.subr.mxu0 0.0
    %71 = vmatpush1.msra.mxu0 0.0
    %72 = vmatprep.subr.mxu0 0.0
    %73 = vmatpush1.msra.mxu0 0.0
    %74 = vmatprep.subr.mxu0 0.0
    %75 = vmatpush1.msra.mxu0 0.0
    %76 = vmatprep.subr.mxu0 0.0
    %77 = vmatpush1.msra.mxu0 0.0
    %78 = vmatprep.subr.mxu0 0.0
    %79 = vmatpush1.msra.mxu0 0.0
    %80 = vmatprep.subr.mxu0 0.0
    %81 = vmatpush1.msra.mxu0 0.0
    %82 = vmatprep.subr.mxu0 0.0
    %83 = vmatpush1.msra.mxu0 0.0
    %84 = vmatprep.subr.mxu0 0.0
    %85 = vmatpush1.msra.mxu0 %v49
    %86 = vmatprep.subr.mxu0 0.0
    %87 = vmatpush1.msra.mxu0 %v48
    %88 = vmatprep.subr.mxu0 0.0
    %89 = vmatpush1.msra.mxu0 %v47
    %90 = vmatprep.subr.mxu0 0.0
    %91 = vmatpush1.msra.mxu0 %v46
    %92 = vmatprep.subr.mxu0 0.0
    %93 = vmatpush2.msra.mxu0 0.0
    %94 = vmatprep.subr.mxu0 0.0
    %95 = vmatpush2.msra.mxu0 0.0
    %96 = vmatprep.subr.mxu0 0.0
    %97 = vmatpush2.msra.mxu0 0.0
    %98 = vmatprep.subr.mxu0 0.0
    %99 = vmatpush2.msra.mxu0 0.0
    %100 = vmatprep.subr.mxu0 0.0
    %101 = vmatpush2.msra.mxu0 0.0
    %102 = vmatprep.subr.mxu0 0.0
    %103 = vmatpush2.msra.mxu0 0.0
    %104 = vmatprep.subr.mxu0 0.0
    %105 = vmatpush2.msra.mxu0 0.0
    %106 = vmatprep.subr.mxu0 0.0
    %107 = vmatpush2.msra.mxu0 0.0
    %108 = vmatprep.subr.mxu0 0.0
    %109 = vmatpush2.msra.mxu0 0.0
    %110 = vmatprep.subr.mxu0 0.0
    %111 = vmatpush2.msra.mxu0 0.0
    %112 = vmatprep.subr.mxu0 0.0
    %113 = vmatpush2.msra.mxu0 0.0
    %114 = vmatprep.subr.mxu0 0.0
    %115 = vmatpush2.msra.mxu0 0.0
    %116 = vmatprep.subr.mxu0 0.0
    %117 = vmatpush2.msra.mxu0 0.0
    %118 = vmatprep.subr.mxu0 0.0
    %119 = vmatpush2.msra.mxu0 0.0
    %120 = vmatprep.subr.mxu0 0.0
    %121 = vmatpush2.msra.mxu0 0.0
    %122 = vmatprep.subr.mxu0 0.0
    %123 = vmatpush2.msra.mxu0 0.0
    %124 = vmatprep.mubr.f32.mxu0 0.0
    %125 = vmatmul.mubr.f32.gmra.mxu0 %v58
    %v126 = vpop.f32.mrf.mxu0
    %v127 = vadd.f32 %v55, %v126
    %v128 = vpop.f32.mrf.mxu0
    %129 = vdwg.mxu0
    %v130 = vmax.f32 %v127, 0.0
    %v131 = vlaneseq
    %v132 = vshrl.u32 %v131, 7
    %v133 = vsub.s32 0, %v132
    %v134 = vrot.slane %v51, %v133
    %v135 = vmul.f32 %v130, %v134
    %136 = vadd.xlane.f32.xlu0 %v135
    %v137 = vpop.xlane.xlu0 %136
    %v138 = vld [vmem:[#allocation2] sm:$0x1]
    %v140 = vlaneseq
    %v141 = vshrl.u32 %v140, 7
    %v142 = vsub.s32 0, %v141
    %v143 = vrot.slane %v138, %v142
    %v145 = vadd.f32 %v137, %v143
    %v146 = vsub.f32 %v145, %v145
    %v147 = vmul.f32 %v146, 1.442695
    %v148 = vpow.pop %v147
    %v149 = vadd.f32 %v148, 0.0
    %v150 = vrcp.pop %v149
    %v151 = vmul.f32 %v148, %v150
    %vm152 = vcmask 7168
    %153 = vst.msk [vmem:[%s4] sm:$0xff] %vm152, %v151
    // Predicated region
    $region26: #{forward.1} parent=1 // pred_check
      _
    $region27: #{forward.1} parent=1 // pred_check_branch
      %155 = sbr.rel (0) target = $region29
    $region28: #{forward.1} parent=1 // pred_region
      _
    $region29: #{forward.1} parent=1 // pred_fallthru
      _
    // Predicated region
    $region30: #{forward.1} parent=1 // pred_check
      _
    $region31: #{forward.1} parent=1 // pred_check_branch
      %157 = sbr.rel (0) target = $region33
    $region32: #{forward.1} parent=1 // pred_region
      _
    $region33: #{forward.1} parent=1 // pred_fallthru
      _
    %158 = vsyncpa [#allocation4], 1
    %159 = vsyncpa [#allocation6], 1

</llo_original>
